<compile_context>
chip_gen: v5e
topology: v5e:2x2
jax: 0.10.0
libtpu: 0.0.40
codegen_flags: <defaults>
</compile_context>

<pallas_src>
import math

import jax
import jax.numpy as jnp
from jax.experimental import pallas as pl
from jax.experimental.pallas import tpu as pltpu


def _add_pos_kernel(x_ref, pos_ref, o_ref):
    # x_ref:   (ts, B, E)  token embedding tile
    # pos_ref: (ts, E)     lane-dense positional tile
    # o_ref:   (ts, B, E)
    o_ref[...] = x_ref[...] + pos_ref[...][:, None, :]


def make_pos_embedding(emb_size: int, maxlen: int, dtype=jnp.float32) -> jnp.ndarray:
    """Deterministic sin/cos positional table, matching the PyTorch __init__.

    Returned lane-dense as (maxlen, emb_size); the singleton batch axis of the
    PyTorch buffer is re-introduced by broadcasting inside the kernel.
    """
    den = jnp.exp(-jnp.arange(0, emb_size, 2, dtype=jnp.float32)
                  * (math.log(10000.0) / emb_size))                   # (E/2,)
    pos = jnp.arange(0, maxlen, dtype=jnp.float32).reshape(maxlen, 1)  # (maxlen, 1)
    angles = pos * den                                                 # (maxlen, E/2)
    pe = jnp.zeros((maxlen, emb_size), dtype=jnp.float32)
    pe = pe.at[:, 0::2].set(jnp.sin(angles))
    pe = pe.at[:, 1::2].set(jnp.cos(angles))
    return pe.astype(dtype)                                            # (maxlen, E)


def _round_up(x: int, m: int) -> int:
    return ((x + m - 1) // m) * m


def _choose_seq_tile(S: int, B: int, E: int, itemsize: int) -> int:
    """Largest sequence tile (multiple of 8) whose per-step tiles fit the budget."""
    per_row = (2 * B * E + E) * itemsize          # x row + out row + pos row
    budget = 16 * 1024 * 1024                     # per-pipeline-slot working set
    ts = max(8, budget // max(per_row, 1))
    ts = min(ts, 1024)                            # diminishing returns beyond this
    ts = max(8, (ts // 8) * 8)                    # sublane-aligned
    # Keep at least 2 grid steps when S allows it (v7x: 2 TensorCores share grid).
    if S > 8 and ts >= S:
        ts = max(8, _round_up(pl.cdiv(S, 2), 8))
    ts = min(ts, _round_up(S, 8))
    return ts


def image_positional_encoding(token_embedding: jnp.ndarray,
                              pos_embedding: jnp.ndarray) -> jnp.ndarray:
    """token_embedding: (S, B, E); pos_embedding: (maxlen, E) or (maxlen, 1, E)."""
    S, B, E = token_embedding.shape

    # Accept the PyTorch-style (maxlen, 1, E) buffer too; flatten to lane-dense 2-D.
    if pos_embedding.ndim == 3:
        pos_embedding = pos_embedding.reshape(pos_embedding.shape[0],
                                              pos_embedding.shape[-1])
    maxlen = pos_embedding.shape[0]
    assert maxlen >= S, "positional table shorter than sequence"
    assert pos_embedding.shape[-1] == E
    # Match dtypes so the in-kernel add does not silently promote/downcast.
    pos_embedding = pos_embedding.astype(token_embedding.dtype)

    itemsize = jnp.dtype(token_embedding.dtype).itemsize
    ts = _choose_seq_tile(S, B, E, itemsize)
    grid = (pl.cdiv(S, ts),)

    # Double-buffered tile footprint + headroom, clamped to fit every generation
    # (<= 48 MiB keeps clear of v7x's 64 MiB physical VMEM per TensorCore).
    per_step_bytes = ts * (2 * B * E + E) * itemsize
    vmem_limit = int(min(48 * 1024 * 1024,
                         max(32 * 1024 * 1024, 2 * per_step_bytes + (8 << 20))))

    out = pl.pallas_call(
        _add_pos_kernel,
        out_shape=jax.ShapeDtypeStruct((S, B, E), token_embedding.dtype),
        grid_spec=pltpu.PrefetchScalarGridSpec(
            num_scalar_prefetch=0,
            grid=grid,
            in_specs=[
                pl.BlockSpec((ts, B, E), lambda i: (i, 0, 0)),
                # Full table passed; grid restricts which rows are ever DMA'd.
                pl.BlockSpec((ts, E), lambda i: (i, 0)),
            ],
            out_specs=pl.BlockSpec((ts, B, E), lambda i: (i, 0, 0)),
        ),
        compiler_params=pltpu.CompilerParams(
            dimension_semantics=("parallel",),
            vmem_limit_bytes=vmem_limit),
    )(token_embedding, pos_embedding)
    return out


if __name__ == "__main__":
    # Small shapes implied by the forward: seq-first transformer embeddings.
    SEQ, BATCH, EMB = 8, 2, 32
    MAXLEN = 64

    key = jax.random.PRNGKey(0)
    token_embedding = jax.random.normal(key, (SEQ, BATCH, EMB), dtype=jnp.float32)

    pos_embedding = make_pos_embedding(EMB, MAXLEN)                  # (MAXLEN, EMB)

    out = image_positional_encoding(token_embedding, pos_embedding)
    out = jax.block_until_ready(out)

    # Reference check in plain JAX (dropout p=0.0 -> identity).
    ref = token_embedding + pos_embedding[:SEQ][:, None, :]
    assert out.shape == (SEQ, BATCH, EMB)
    assert jnp.allclose(out, ref, atol=1e-6), "mismatch vs reference"

    print("KERNEL_OK")
</pallas_src>

<mosaic_0001>
module attributes {stable_mosaic.version = 11 : i64} {
  func.func @_add_pos_kernel(%arg0: i32, %arg1: memref<8x2x32xf32, #tpu.memory_space<vmem>>, %arg2: memref<8x32xf32, #tpu.memory_space<vmem>>, %arg3: memref<8x2x32xf32, #tpu.memory_space<vmem>>) attributes {dimension_semantics = [#tpu.dimension_semantics<parallel>], iteration_bounds = array<i64: 1>, scalar_prefetch = 0 : i64, scratch_operands = 0 : i64, tpu.core_type = #tpu.core_type<tc>, window_params = [{transform_indices = @transform_0, window_bounds = array<i64: 8, 2, 32>}, {transform_indices = @transform_1, window_bounds = array<i64: 8, 32>}, {transform_indices = @transform_2, window_bounds = array<i64: 8, 2, 32>}]} {
    %c0 = arith.constant 0 : index
    %c0_0 = arith.constant 0 : index
    %c0_1 = arith.constant 0 : index
    %0 = vector.load %arg1[%c0, %c0_0, %c0_1] : memref<8x2x32xf32, #tpu.memory_space<vmem>>, vector<8x2x32xf32>
    %c0_2 = arith.constant 0 : index
    %c0_3 = arith.constant 0 : index
    %1 = vector.load %arg2[%c0_2, %c0_3] : memref<8x32xf32, #tpu.memory_space<vmem>>, vector<8x32xf32>
    %2 = vector.shape_cast %1 : vector<8x32xf32> to vector<8x1x32xf32>
    %3 = vector.broadcast %2 : vector<8x1x32xf32> to vector<8x2x32xf32>
    %4 = arith.addf %0, %3 : vector<8x2x32xf32>
    %c0_4 = arith.constant 0 : index
    %c0_5 = arith.constant 0 : index
    %c0_6 = arith.constant 0 : index
    %5 = vector.load %arg3[%c0_4, %c0_5, %c0_6] : memref<8x2x32xf32, #tpu.memory_space<vmem>>, vector<8x2x32xf32>
    tpu.vector_store %arg3[%c0_4, %c0_5, %c0_6], %4 {strides = array<i32>} : memref<8x2x32xf32, #tpu.memory_space<vmem>>, vector<8x2x32xf32>,
    return
  }
  func.func @transform_0(%arg0: i32) -> (i32, i32, i32) {
    %c0_i32 = arith.constant 0 : i32
    %c0_i32_0 = arith.constant 0 : i32
    %c0_i32_1 = arith.constant 0 : i32
    return %arg0, %c0_i32, %c0_i32_0 : i32, i32, i32
  }
  func.func @transform_1(%arg0: i32) -> (i32, i32) {
    %c0_i32 = arith.constant 0 : i32
    %c0_i32_0 = arith.constant 0 : i32
    return %arg0, %c0_i32 : i32, i32
  }
  func.func @transform_2(%arg0: i32) -> (i32, i32, i32) {
    %c0_i32 = arith.constant 0 : i32
    %c0_i32_0 = arith.constant 0 : i32
    %c0_i32_1 = arith.constant 0 : i32
    return %arg0, %c0_i32, %c0_i32_0 : i32, i32, i32
  }
}

</mosaic_0001>

<llo_original>
// kernel: tpu_custom_call.1
$region0: #{tpu_custom_call.1}
  #allocation0 [shape = 'u32[]', space=smem, size = 0x4, offset = 0x4, fixed_abs, tag = 'smem constant byte address 0x4 - core index']
  #allocation1 [shape = 'u32[72,128]{1,0:T(1,128)}', space=vmem, size = 0x9000, scoped, tag = 'internal scratch']
  %s0 = inlined_call_operand.vmem [shape: f32[8,2,32], index: 0, kind: input, shape index: {}]
  %s1 = inlined_call_operand.vmem [shape: f32[64,32], index: 1, kind: input, shape index: {}]
  %s2 = inlined_call_operand.hbm [shape: f32[8,2,32], index: 2, kind: output, shape index: {}]
  %s3 = sld [smem:[#allocation0]]
  $region18: #{tpu_custom_call.1} parent=0
    _
  %s5 = ssub.s32 1, %s3
  %s6 = scalar_select 0, %s5, %s3
  $region1: #{tpu_custom_call.1} parent=0
    #allocation2 [shape = 'u8[8192]{0}', space=vmem, size = 0x2000, scoped, tag = 'output window, operand 0, single buffered']
    #allocation3 [shape = 's32[1]{0}', space=sflag, size = 0x4, scoped, tag = 'scoped memory for tpu_custom_call.1']
    %7 = vsyncpa [#allocation3], 0
    // Predicated region
    $region2: #{tpu_custom_call.1} parent=1 // pred_check
      _
    $region3: #{tpu_custom_call.1} parent=1 // pred_check_branch
      %9 = sbr.rel (0) target = $region5
    $region4: #{tpu_custom_call.1} parent=1 // pred_region
      _
    $region5: #{tpu_custom_call.1} parent=1 // pred_fallthru
      _
    // Predicated region
    $region6: #{tpu_custom_call.1} parent=1 // pred_check
      _
    $region7: #{tpu_custom_call.1} parent=1 // pred_check_branch
      %11 = sbr.rel (0) target = $region9
    $region8: #{tpu_custom_call.1} parent=1 // pred_region
      _
    $region9: #{tpu_custom_call.1} parent=1 // pred_fallthru
      _
    %v12 = vld [vmem:[%s0] sm:$0x3]
    %v13 = vld [vmem:[%s0 + $0x2] sm:$0x3]
    %v14 = vld [vmem:[%s0 + $0x4] sm:$0x3]
    %v15 = vld [vmem:[%s0 + $0x6] sm:$0x3]
    %v16 = vld [vmem:[%s0 + $0x8] sm:$0x3]
    %v17 = vld [vmem:[%s0 + $0xa] sm:$0x3]
    %v18 = vld [vmem:[%s0 + $0xc] sm:$0x3]
    %v19 = vld [vmem:[%s0 + $0xe] sm:$0x3]
    %v20 = vld [vmem:[%s1] sm:$0xff]
    %v22 = vrot.slane %v20, 1
    %v23 = vrot.slane %v20, 2
    %v24 = vrot.slane %v20, 3
    %v25 = vrot.slane %v20, 4
    %v26 = vrot.slane %v20, 5
    %v27 = vrot.slane %v20, 6
    %v28 = vrot.slane %v20, 7
    %v29 = vperm.slane %v20, 0
    %v30 = vperm.slane %v22, 0
    %v31 = vperm.slane %v23, 0
    %v32 = vperm.slane %v24, 0
    %v33 = vperm.slane %v25, 0
    %v34 = vperm.slane %v26, 0
    %v35 = vperm.slane %v27, 0
    %v36 = vperm.slane %v28, 0
    %v45 = vadd.f32 %v12, %v29
    %v46 = vadd.f32 %v13, %v30
    %v47 = vadd.f32 %v14, %v31
    %v48 = vadd.f32 %v15, %v32
    %v49 = vadd.f32 %v16, %v33
    %v50 = vadd.f32 %v17, %v34
    %v51 = vadd.f32 %v18, %v35
    %v52 = vadd.f32 %v19, %v36
    %vm53 = vcmask 254976
    %54 = vst.msk [vmem:[#allocation2] sm:$0x3] %vm53, %v45
    %55 = vst.msk [vmem:[#allocation2 + $0x2] sm:$0x3] %vm53, %v46
    %56 = vst.msk [vmem:[#allocation2 + $0x4] sm:$0x3] %vm53, %v47
    %57 = vst.msk [vmem:[#allocation2 + $0x6] sm:$0x3] %vm53, %v48
    %58 = vst.msk [vmem:[#allocation2 + $0x8] sm:$0x3] %vm53, %v49
    %59 = vst.msk [vmem:[#allocation2 + $0xa] sm:$0x3] %vm53, %v50
    %60 = vst.msk [vmem:[#allocation2 + $0xc] sm:$0x3] %vm53, %v51
    %61 = vst.msk [vmem:[#allocation2 + $0xe] sm:$0x3] %vm53, %v52
    // Predicated region
    $region10: #{tpu_custom_call.1} parent=1 // pred_check
      _
    $region11: #{tpu_custom_call.1} parent=1 // pred_check_branch
      %63 = sbr.rel (0) target = $region13
    $region12: #{tpu_custom_call.1} parent=1 // pred_region
      %65 = vsyncadd [#allocation3], 0
      %s66 = sshll.u32 [#allocation2], 4
      %s67 = int_to_ptr.vmem [resolvable:$true] %s66
      %s68 = sshll.u32 %s2, 4
      %s69 = int_to_ptr.hbm [resolvable:$true] %s68
      %74 = dma.vmem_to_hbm [thread:$0]  %s67, 256, %s69, [#allocation3], 32, 32, 2
    $region13: #{tpu_custom_call.1} parent=1 // pred_fallthru
      _
    // Predicated region
    $region14: #{tpu_custom_call.1} parent=1 // pred_check
      _
    $region15: #{tpu_custom_call.1} parent=1 // pred_check_branch
      %76 = sbr.rel (0) target = $region17
    $region16: #{tpu_custom_call.1} parent=1 // pred_region
      %78 = dma.done [#allocation3], 256
    $region17: #{tpu_custom_call.1} parent=1 // pred_fallthru
      _
    %79 = vsyncpa [#allocation3], 1

</llo_original>
